<compile_context>
chip_gen: v7x
topology: tpu7x:2x2x1
jax: 0.10.0
libtpu: 0.0.40
codegen_flags: <defaults>
</compile_context>

<pallas_src>
import jax
import jax.numpy as jnp
from jax.experimental import pallas as pl
from jax.experimental.pallas import tpu as pltpu


# ----------------------------------------------------------------------------
# Fused Pallas kernel: BN(affine, eval) + ReLU + masked 1x1 conv (as a matmul)
# ----------------------------------------------------------------------------
def _lgc_kernel(x_ref, ss_ref, w_ref, o_ref):
    # x_ref:  (BB, Cin, TP)   input tile, flattened spatial on lanes (native dtype)
    # ss_ref: (2, Cin, 1)     folded BN constants: ss[0]=scale, ss[1]=shift (f32)
    # w_ref:  (Cout, Cin)     masked 1x1 conv weight (f32)
    # o_ref:  (BB, Cout, TP)  output tile, spatial on lanes (lane-dense)
    scale = ss_ref[0][None]                        # (1, Cin, 1)
    shift = ss_ref[1][None]                        # (1, Cin, 1)
    a = jnp.maximum(x_ref[...].astype(jnp.float32) * scale + shift, 0.0)  # (BB, Cin, TP)
    bb = x_ref.shape[0]
    # Small static unroll over the batch sub-block; each is a lane-dense
    # (Cout, Cin) @ (Cin, TP) MXU matmul with unmasked stores.
    for i in range(bb):
        o_ref[i] = jnp.dot(
            w_ref[...], a[i], preferred_element_type=jnp.float32
        ).astype(o_ref.dtype)


def learned_group_conv_forward(x_nchw, params, *, stride=1, eps=1e-5):
    """x: (B, Cin, H, W) NCHW  ->  (B, Cout, Ho, Wo) NCHW (same dtype as x)."""
    w = params["conv_weight"]          # (Cout, Cin, 1, 1)
    mask = params["mask"]              # (Cout, Cin, 1, 1)
    gamma, beta = params["bn_gamma"], params["bn_beta"]
    mean, var = params["bn_mean"], params["bn_var"]

    B, Cin, H, W = x_nchw.shape
    Cout = w.shape[0]
    assert w.shape[1] == Cin and w.shape[2] == 1 and w.shape[3] == 1, (
        "only 1x1 kernels are lowered to Pallas (see TODO above)")

    # Tiny per-channel folding (host side): BN affine + weight masking.
    scale = (gamma / jnp.sqrt(var + eps)).astype(jnp.float32)             # (Cin,)
    shift = (beta - mean * scale).astype(jnp.float32)                     # (Cin,)
    ss = jnp.stack([scale, shift]).reshape(2, Cin, 1)                     # (2, Cin, 1)
    wm = (w * mask).reshape(Cout, Cin).astype(jnp.float32)                # (Cout, Cin)

    # 1x1 conv with stride == pointwise matmul on a strided spatial subsample;
    # BN+ReLU are pointwise, so subsampling first is exactly equivalent.
    xs = x_nchw[:, :, ::stride, ::stride] if stride != 1 else x_nchw
    Ho, Wo = xs.shape[2], xs.shape[3]
    P = Ho * Wo
    xf = xs.reshape(B, Cin, P)          # free contiguous reshape, native dtype
    out_dtype = x_nchw.dtype
    in_b = x_nchw.dtype.itemsize
    out_b = jnp.dtype(out_dtype).itemsize

    # ---- tile sizing from a per-generation VMEM budget ----------------------
    try:
        vmem_cap = int(pltpu.get_tpu_info().vmem_capacity_bytes)
    except Exception:
        vmem_cap = 64 * 1024 * 1024            # conservative (v7x per-TC size)
    vmem_limit = min(vmem_cap * 3 // 4, 96 * 1024 * 1024)
    tile_budget = vmem_limit // 3              # headroom for constants/scratch
    per_col = 2 * (Cin * in_b + Cout * out_b)  # double-buffered bytes / column
    cols_budget = max(128, tile_budget // per_col)

    if P <= cols_budget:
        # Small image: whole spatial extent in one lane-dense tile; block
        # several batch elements per step to amortize per-step overhead.
        TP = P
        BB = max(1, min(B, cols_budget // P, 16))
        if B >= 2:                       # keep >=2 grid steps for v7x's 2 TCs
            BB = min(BB, pl.cdiv(B, 2))
        if B == 1 and P >= 256:          # single image: split spatial instead
            half = pl.cdiv(pl.cdiv(P, 2), 128) * 128
            if half < P:
                TP = half
    else:
        BB = 1
        TP = min(16 * 1024, (cols_budget // 128) * 128)

    grid = (pl.cdiv(B, BB), pl.cdiv(P, TP))

    cost = pl.CostEstimate(
        flops=int(2 * B * Cout * Cin * P),
        transcendentals=0,
        bytes_accessed=int(B * P * (Cin * in_b + Cout * out_b)
                           + Cout * Cin * 4 + 2 * Cin * 4),
    )

    out = pl.pallas_call(
        _lgc_kernel,
        out_shape=jax.ShapeDtypeStruct((B, Cout, P), out_dtype),
        grid=grid,
        in_specs=[
            pl.BlockSpec((BB, Cin, TP), lambda b, p: (b, 0, p)),
            pl.BlockSpec((2, Cin, 1), lambda b, p: (0, 0, 0)),
            pl.BlockSpec((Cout, Cin), lambda b, p: (0, 0)),
        ],
        out_specs=pl.BlockSpec((BB, Cout, TP), lambda b, p: (b, 0, p)),
        compiler_params=pltpu.CompilerParams(
            dimension_semantics=("parallel", "parallel"),
            vmem_limit_bytes=int(vmem_limit),
        ),
        cost_estimate=cost,
    )(xf, ss, wm)

    return out.reshape(B, Cout, Ho, Wo)


# ----------------------------------------------------------------------------
# Pure-JAX reference (for correctness check)
# ----------------------------------------------------------------------------
def reference_forward(x_nchw, params, *, stride=1, eps=1e-5):
    gamma, beta = params["bn_gamma"], params["bn_beta"]
    mean, var = params["bn_mean"], params["bn_var"]
    a = (x_nchw - mean[None, :, None, None]) / jnp.sqrt(var[None, :, None, None] + eps)
    a = a * gamma[None, :, None, None] + beta[None, :, None, None]
    a = jnp.maximum(a, 0.0)
    wm = params["conv_weight"] * params["mask"]          # (Cout, Cin, 1, 1)
    return jax.lax.conv_general_dilated(
        a, wm, window_strides=(stride, stride), padding="VALID",
        dimension_numbers=("NCHW", "OIHW", "NCHW"))


# ----------------------------------------------------------------------------
if __name__ == "__main__":
    key = jax.random.PRNGKey(0)
    ks = jax.random.split(key, 7)

    # LearnedGroupConv(16 -> 32, kernel_size=1, groups=4, condense_factor=4)
    # on a (2, 16, 16, 16) NCHW input.
    B, Cin, H, W = 2, 16, 16, 16
    Cout = 32

    x = jax.random.normal(ks[0], (B, Cin, H, W), jnp.float32)
    params = {
        "conv_weight": 0.1 * jax.random.normal(ks[1], (Cout, Cin, 1, 1), jnp.float32),
        # emulate a partially condensed mask (some input connections zeroed)
        "mask": (jax.random.uniform(ks[2], (Cout, Cin, 1, 1)) > 0.25).astype(jnp.float32),
        "bn_gamma": 1.0 + 0.1 * jax.random.normal(ks[3], (Cin,), jnp.float32),
        "bn_beta": 0.1 * jax.random.normal(ks[4], (Cin,), jnp.float32),
        "bn_mean": 0.1 * jax.random.normal(ks[5], (Cin,), jnp.float32),
        "bn_var": jax.random.uniform(ks[6], (Cin,), jnp.float32, 0.5, 1.5),
    }

    out = jax.block_until_ready(learned_group_conv_forward(x, params))
    ref = jax.block_until_ready(reference_forward(x, params))

    assert out.shape == (B, Cout, H, W), out.shape
    max_err = float(jnp.max(jnp.abs(out - ref)))
    assert jnp.allclose(out, ref, atol=1e-3, rtol=1e-3), max_err
    print("KERNEL_OK")
</pallas_src>

<mosaic_0001>
module attributes {stable_mosaic.version = 11 : i64} {
  func.func @_lgc_kernel(%arg0: i32, %arg1: i32, %arg2: memref<1x16x256xf32, #tpu.memory_space<vmem>>, %arg3: memref<2x16x1xf32, #tpu.memory_space<vmem>>, %arg4: memref<32x16xf32, #tpu.memory_space<vmem>>, %arg5: memref<1x32x256xf32, #tpu.memory_space<vmem>>) attributes {dimension_semantics = [#tpu.dimension_semantics<parallel>, #tpu.dimension_semantics<parallel>], iteration_bounds = array<i64: 2, 1>, scalar_prefetch = 0 : i64, scratch_operands = 0 : i64, tpu.core_type = #tpu.core_type<tc>, window_params = [{transform_indices = @transform_0, window_bounds = array<i64: 1, 16, 256>}, {pipeline_mode = #tpu.pipeline_mode<synchronous>, transform_indices = @transform_1, window_bounds = array<i64: 2, 16, 1>}, {pipeline_mode = #tpu.pipeline_mode<synchronous>, transform_indices = @transform_2, window_bounds = array<i64: 32, 16>}, {transform_indices = @transform_3, window_bounds = array<i64: 1, 32, 256>}]} {
    %c0 = arith.constant 0 : index
    %c0_0 = arith.constant 0 : index
    %c0_1 = arith.constant 0 : index
    %0 = vector.load %arg3[%c0, %c0_0, %c0_1] : memref<2x16x1xf32, #tpu.memory_space<vmem>>, vector<1x16x1xf32>
    %1 = vector.shape_cast %0 : vector<1x16x1xf32> to vector<16x1xf32>
    %2 = vector.shape_cast %1 : vector<16x1xf32> to vector<1x16x1xf32>
    %c1 = arith.constant 1 : index
    %c0_2 = arith.constant 0 : index
    %c0_3 = arith.constant 0 : index
    %3 = vector.load %arg3[%c1, %c0_2, %c0_3] : memref<2x16x1xf32, #tpu.memory_space<vmem>>, vector<1x16x1xf32>
    %4 = vector.shape_cast %3 : vector<1x16x1xf32> to vector<16x1xf32>
    %5 = vector.shape_cast %4 : vector<16x1xf32> to vector<1x16x1xf32>
    %c0_4 = arith.constant 0 : index
    %c0_5 = arith.constant 0 : index
    %c0_6 = arith.constant 0 : index
    %6 = vector.load %arg2[%c0_4, %c0_5, %c0_6] : memref<1x16x256xf32, #tpu.memory_space<vmem>>, vector<1x16x256xf32>
    %7 = vector.broadcast %2 : vector<1x16x1xf32> to vector<1x16x256xf32>
    %8 = arith.mulf %6, %7 : vector<1x16x256xf32>
    %9 = vector.broadcast %5 : vector<1x16x1xf32> to vector<1x16x256xf32>
    %10 = arith.addf %8, %9 : vector<1x16x256xf32>
    %cst = arith.constant 0.000000e+00 : f32
    %11 = vector.broadcast %cst : f32 to vector<1x16x256xf32>
    %12 = arith.maximumf %10, %11 : vector<1x16x256xf32>
    %c0_7 = arith.constant 0 : index
    %c0_8 = arith.constant 0 : index
    %13 = vector.load %arg4[%c0_7, %c0_8] : memref<32x16xf32, #tpu.memory_space<vmem>>, vector<32x16xf32>
    %14 = vector.shape_cast %12 : vector<1x16x256xf32> to vector<16x256xf32>
    %cst_9 = arith.constant dense<0.000000e+00> : vector<32x256xf32>
    %15 = tpu.matmul %13, %14, %cst_9 {dimension_numbers = #tpu.dot_dimension_numbers<[1], [0], [0], [1], [0, 0, 1, 1], [], []>} : vector<32x16xf32>, vector<16x256xf32>, vector<32x256xf32> -> vector<32x256xf32>
    %c0_10 = arith.constant 0 : index
    %c0_11 = arith.constant 0 : index
    %c0_12 = arith.constant 0 : index
    %16 = vector.load %arg5[%c0_10, %c0_11, %c0_12] : memref<1x32x256xf32, #tpu.memory_space<vmem>>, vector<1x32x256xf32>
    %17 = vector.shape_cast %16 : vector<1x32x256xf32> to vector<32x256xf32>
    %18 = vector.shape_cast %15 : vector<32x256xf32> to vector<1x32x256xf32>
    tpu.vector_store %arg5[%c0_10, %c0_11, %c0_12], %18 {strides = array<i32>} : memref<1x32x256xf32, #tpu.memory_space<vmem>>, vector<1x32x256xf32>,
    return
  }
  func.func @transform_0(%arg0: i32, %arg1: i32) -> (i32, i32, i32) {
    %c0_i32 = arith.constant 0 : i32
    %c0_i32_0 = arith.constant 0 : i32
    return %arg0, %c0_i32, %arg1 : i32, i32, i32
  }
  func.func @transform_1(%arg0: i32, %arg1: i32) -> (i32, i32, i32) {
    %c0_i32 = arith.constant 0 : i32
    %c0_i32_0 = arith.constant 0 : i32
    %c0_i32_1 = arith.constant 0 : i32
    %c0_i32_2 = arith.constant 0 : i32
    return %c0_i32, %c0_i32_0, %c0_i32_1 : i32, i32, i32
  }
  func.func @transform_2(%arg0: i32, %arg1: i32) -> (i32, i32) {
    %c0_i32 = arith.constant 0 : i32
    %c0_i32_0 = arith.constant 0 : i32
    %c0_i32_1 = arith.constant 0 : i32
    return %c0_i32, %c0_i32_0 : i32, i32
  }
  func.func @transform_3(%arg0: i32, %arg1: i32) -> (i32, i32, i32) {
    %c0_i32 = arith.constant 0 : i32
    %c0_i32_0 = arith.constant 0 : i32
    return %arg0, %c0_i32, %arg1 : i32, i32, i32
  }
}

</mosaic_0001>

<llo_original>
// kernel: tpu_custom_call.1
$region0: #{tpu_custom_call.1}
  #allocation0 [shape = 'u32[]', space=smem, size = 0x4, offset = 0x4, fixed_abs, tag = 'smem constant byte address 0x4 - core index']
  #allocation1 [shape = 'u32[144,128]{1,0:T(1,128)}', space=vmem, size = 0x12000, scoped, tag = 'internal scratch']
  %s0 = inlined_call_operand.vmem [shape: f32[2,16,256], index: 0, kind: input, shape index: {}]
  %s1 = inlined_call_operand.vmem [shape: f32[2,16,1], index: 1, kind: input, shape index: {}]
  %s2 = inlined_call_operand.vmem [shape: f32[32,16], index: 2, kind: input, shape index: {}]
  %s3 = inlined_call_operand.hbm [shape: f32[2,32,256], index: 3, kind: output, shape index: {}]
  %s4 = sld [smem:[#allocation0]]
  $region45: #{tpu_custom_call.1} parent=0
    _
  %s6 = ssub.s32 1, %s4
  %s7 = scalar_select 0, %s6, %s4
  $region1: #{tpu_custom_call.1} parent=0
    #allocation2 [shape = 'u8[65536]{0}', space=vmem, size = 0x10000, scoped, tag = 'output window, operand 0']
    #allocation3 [shape = 's32[2]{0}', space=sflag, size = 0x8, scoped, tag = 'scoped memory for tpu_custom_call.1']
    %8 = vsyncpa [#allocation3], 0
    %s9 = scalar_lea.sflag [#allocation3], 1
    %10 = vsyncpa %s9, 0
    loop: start=0, step=1, limit=4
    $region2: #{tpu_custom_call.1} parent=1 // loop_pre_header
      _
    $region3: #{tpu_custom_call.1} parent=1 // loop_header
      %s12 = sphi 0, %s16
      %p13 = scmp.ge.s32.totalorder %s12, 4
      %s19 = sphi 0, %s31
      %s20 = sphi 0, %s27
      %s21 = sphi 0, %s19
      %s22 = sphi 0, %s20
      %s23 = sphi 0, %s21
      %s24 = sphi 0, %s22
      %s36 = sphi 0, %s38
      %s39 = sphi 0, %s36
      %s40 = sphi 0, %s39
      %s56 = sphi 0, %s40
      %s60 = sphi 0, %s60
      %s62 = sphi 0, %s60
      %s63 = sphi 0, %s62
      %s77 = sphi 0, %s63
      %s81 = sphi 0, %s81
      %s83 = sphi 0, %s81
      %s84 = sphi 0, %s83
      %s98 = sphi 0, %s84
      %s106 = sphi 0, %s108
      %s109 = sphi 0, %s106
      %s110 = sphi 0, %s109
      %s126 = sphi 0, %s110
    $region4: #{tpu_custom_call.1} parent=1 // loop_header_branch
      %15 = sbr.rel (%p13) target = $region8
    $region5: #{tpu_custom_call.1} parent=1 // loop_body
      %s17 = ssub.s32 %s12, 1
      %s18 = ssub.s32 %s12, 2
      %s25 = sadd.s32 1, %s20
      %p26 = scmp.ge.s32.totalorder %s25, 1
      %s27 = scalar_select %p26, 0, %s25
      %s28 = sadd.s32 1, %s19
      %s29 = scalar_select %p26, %s28, %s19
      %p30 = scmp.ge.s32.totalorder %s29, 2
      %s31 = scalar_select %p30, 0, %s29
      %s32 = ssub.s32 %s19, %s31
      %s33 = ssub.s32 %s20, %s27
      %s34 = sor.u32 %s32, %s33
      %p35 = scmp.eq.s32.totalorder %s34, 0
      %s37 = sadd.s32 %s36, 1
      %s38 = scalar_select %p35, %s36, %s37
      %p41 = pneg %p35
      %p42 = scmp.eq.s32.totalorder %s12, 1
      %p43 = por %p41, %p42
      %p44 = scmp.ne.s32.totalorder %s36, %s39
      %p45 = scmp.eq.s32.totalorder %s12, 0
      %p46 = por %p44, %p45
      %p47 = scmp.ne.s32.totalorder %s36, %s39
      %p48 = scmp.eq.s32.totalorder %s17, 1
      %p49 = por %p47, %p48
      %p50 = scmp.ne.s32.totalorder %s39, %s40
      %p51 = scmp.eq.s32.totalorder %s17, 0
      %p52 = por %p50, %p51
      %p53 = scmp.ne.s32.totalorder %s39, %s40
      %p54 = scmp.eq.s32.totalorder %s18, 1
      %p55 = por %p53, %p54
      %p57 = scmp.ne.s32.totalorder %s40, %s56
      %p58 = scmp.eq.s32.totalorder %s18, 0
      %p59 = por %p57, %p58
      %s61 = sadd.s32 %s60, 1
      %p64 = scmp.eq.s32.totalorder %s12, 1
      %p65 = scmp.ne.s32.totalorder %s60, %s62
      %p66 = scmp.eq.s32.totalorder %s12, 0
      %p67 = por %p65, %p66
      %p68 = scmp.ne.s32.totalorder %s60, %s62
      %p69 = scmp.eq.s32.totalorder %s17, 1
      %p70 = por %p68, %p69
      %p71 = scmp.ne.s32.totalorder %s62, %s63
      %p72 = scmp.eq.s32.totalorder %s17, 0
      %p73 = por %p71, %p72
      %p74 = scmp.ne.s32.totalorder %s62, %s63
      %p75 = scmp.eq.s32.totalorder %s18, 1
      %p76 = por %p74, %p75
      %p78 = scmp.ne.s32.totalorder %s63, %s77
      %p79 = scmp.eq.s32.totalorder %s18, 0
      %p80 = por %p78, %p79
      %s82 = sadd.s32 %s81, 1
      %p85 = scmp.eq.s32.totalorder %s12, 1
      %p86 = scmp.ne.s32.totalorder %s81, %s83
      %p87 = scmp.eq.s32.totalorder %s12, 0
      %p88 = por %p86, %p87
      %p89 = scmp.ne.s32.totalorder %s81, %s83
      %p90 = scmp.eq.s32.totalorder %s17, 1
      %p91 = por %p89, %p90
      %p92 = scmp.ne.s32.totalorder %s83, %s84
      %p93 = scmp.eq.s32.totalorder %s17, 0
      %p94 = por %p92, %p93
      %p95 = scmp.ne.s32.totalorder %s83, %s84
      %p96 = scmp.eq.s32.totalorder %s18, 1
      %p97 = por %p95, %p96
      %p99 = scmp.ne.s32.totalorder %s84, %s98
      %p100 = scmp.eq.s32.totalorder %s18, 0
      %p101 = por %p99, %p100
      %s102 = ssub.s32 %s19, %s31
      %s103 = ssub.s32 %s20, %s27
      %s104 = sor.u32 %s102, %s103
      %p105 = scmp.eq.s32.totalorder %s104, 0
      %s107 = sadd.s32 %s106, 1
      %s108 = scalar_select %p105, %s106, %s107
      %p111 = pneg %p105
      %p112 = scmp.eq.s32.totalorder %s12, 1
      %p113 = por %p111, %p112
      %p114 = scmp.ne.s32.totalorder %s106, %s109
      %p115 = scmp.eq.s32.totalorder %s12, 0
      %p116 = por %p114, %p115
      %p117 = scmp.ne.s32.totalorder %s106, %s109
      %p118 = scmp.eq.s32.totalorder %s17, 1
      %p119 = por %p117, %p118
      %p120 = scmp.ne.s32.totalorder %s109, %s110
      %p121 = scmp.eq.s32.totalorder %s17, 0
      %p122 = por %p120, %p121
      %p123 = scmp.ne.s32.totalorder %s109, %s110
      %p124 = scmp.eq.s32.totalorder %s18, 1
      %p125 = por %p123, %p124
      %p127 = scmp.ne.s32.totalorder %s110, %s126
      %p128 = scmp.eq.s32.totalorder %s18, 0
      %p129 = por %p127, %p128
      %p130 = scmp.le.s32.totalorder 1, %s12
      %p131 = scmp.lt.s32.totalorder %s12, 3
      %p132 = pnand %p130, %p131
      %p133 = pneg %p132
      // Predicated region
      $region9: #{tpu_custom_call.1} parent=5 // pred_check
        _
      $region10: #{tpu_custom_call.1} parent=5 // pred_check_branch
        %135 = sbr.rel (%p132) target = $region12
      $region11: #{tpu_custom_call.1} parent=5 // pred_region
        %s136 = ssub.s32 %s12, 1
        // Predicated region
        $region13: #{tpu_custom_call.1} parent=11 // pred_check
          %p137 = pneg %p73
        $region14: #{tpu_custom_call.1} parent=11 // pred_check_branch
          %139 = sbr.rel (%p137) target = $region16
        $region15: #{tpu_custom_call.1} parent=11 // pred_region
          _
        $region16: #{tpu_custom_call.1} parent=11 // pred_fallthru
          _
        // Predicated region
        $region17: #{tpu_custom_call.1} parent=11 // pred_check
          %p140 = pneg %p94
        $region18: #{tpu_custom_call.1} parent=11 // pred_check_branch
          %142 = sbr.rel (%p140) target = $region20
        $region19: #{tpu_custom_call.1} parent=11 // pred_region
          _
        $region20: #{tpu_custom_call.1} parent=11 // pred_fallthru
          _
      $region12: #{tpu_custom_call.1} parent=5 // pred_fallthru
        _
      %p143 = scmp.lt.s32.totalorder %s12, 2
      // Predicated region
      $region21: #{tpu_custom_call.1} parent=5 // pred_check
        %p144 = pneg %p143
      $region22: #{tpu_custom_call.1} parent=5 // pred_check_branch
        %146 = sbr.rel (%p144) target = $region24
      $region23: #{tpu_custom_call.1} parent=5 // pred_region
        // Predicated region
        $region25: #{tpu_custom_call.1} parent=23 // pred_check
          %p147 = pneg %p46
        $region26: #{tpu_custom_call.1} parent=23 // pred_check_branch
          %149 = sbr.rel (%p147) target = $region28
        $region27: #{tpu_custom_call.1} parent=23 // pred_region
          %s150 = smul.u32 2, %s20
          %p151 = scmp.lt.s32.totalorder %s19, 1
          %s152 = scalar_select %p151, %s19, 1
          %p153 = scmp.lt.s32.totalorder %s150, 1
          %s154 = scalar_select %p153, %s150, 1
          %s155 = smul.addr %s152, 4
          %s156 = sadd.s32 %s154, %s155
          %s157 = smul.addr %s156, 8
          %s158 = scalar_lea.vmem %s0, %s157
          %s159 = smul.u32 2, %s20
        $region28: #{tpu_custom_call.1} parent=23 // pred_fallthru
          _
      $region24: #{tpu_custom_call.1} parent=5 // pred_fallthru
        _
      %p160 = scmp.le.s32.totalorder 1, %s12
      %p161 = scmp.lt.s32.totalorder %s12, 3
      %p162 = pnand %p160, %p161
      %p163 = pneg %p162
      // Predicated region
      $region29: #{tpu_custom_call.1} parent=5 // pred_check
        _
      $region30: #{tpu_custom_call.1} parent=5 // pred_check_branch
        %165 = sbr.rel (%p162) target = $region32
      $region31: #{tpu_custom_call.1} parent=5 // pred_region
        %s166 = ssub.s32 %s12, 1
        %s167 = smul.u32 2, %s22
        %p168 = scmp.lt.s32.totalorder %s21, 1
        %s169 = scalar_select %p168, %s21, 1
        %p170 = scmp.lt.s32.totalorder %s167, 1
        %s171 = scalar_select %p170, %s167, 1
        %s172 = smul.addr %s169, 4
        %s173 = sadd.s32 %s171, %s172
        %s174 = smul.addr %s173, 8
        %s175 = scalar_lea.vmem %s0, %s174
        %p176 = pneg %p52
        %p177 = pneg %p49
        %p178 = pneg %p73
        %p179 = pneg %p70
        %p180 = pneg %p94
        %p181 = pneg %p91
        %p182 = pneg %p122
        %p183 = pneg %p119
        %s184 = sand.u32 %s109, 1
        %s185 = scalar_lea.sflag [#allocation3], %s184
        %s186 = sand.u32 %s109, 1
        %s187 = smul.addr %s186, 64
        %s188 = scalar_lea.vmem [#allocation2], %s187
        %s189 = smul.u32 2, %s22
        %p190 = scmp.lt.s32.totalorder %s21, 1
        %s191 = scalar_select %p190, %s21, 1
        %p192 = scmp.lt.s32.totalorder %s189, 1
        %s193 = scalar_select %p192, %s189, 1
        %s194 = smul.addr %s191, 4
        %s195 = sadd.s32 %s193, %s194
        %s196 = smul.addr %s195, 8
        %s197 = scalar_lea.vmem %s0, %s196
        %s198 = smul.u32 2, %s22
        %s199 = smul.u32 2, %s22
        %v200 = vld [vmem:[%s1] sm:$0xff]
        %v201 = vld [vmem:[%s1 + $0x8] sm:$0xff]
        %s202 = scalar_lea.vmem %s1, 16
        %v203 = vld [vmem:[%s202] sm:$0xff]
        %v204 = vld [vmem:[%s202 + $0x8] sm:$0xff]
        %v205 = vld [vmem:[%s197] sm:$0xff]
        %v206 = vld [vmem:[%s197 + $0x8] sm:$0xff]
        %v207 = vld [vmem:[%s197 + $0x10] sm:$0xff]
        %v208 = vld [vmem:[%s197 + $0x18] sm:$0xff]
        %210 = vset.pattern.permute.xlu0 0
        %211 = vperm.xlu0 %210, %v200
        %v212 = vpop.permute.xlu0 %211
        %215 = vset.pattern.permute.xlu0 0
        %216 = vperm.xlu0 %215, %v201
        %v217 = vpop.permute.xlu0 %216
        %v219 = vmul.f32 %v205, %v212
        %v220 = vmul.f32 %v206, %v212
        %v221 = vmul.f32 %v207, %v217
        %v222 = vmul.f32 %v208, %v217
        %224 = vset.pattern.permute.xlu0 0
        %225 = vperm.xlu0 %224, %v203
        %v226 = vpop.permute.xlu0 %225
        %229 = vset.pattern.permute.xlu0 0
        %230 = vperm.xlu0 %229, %v204
        %v231 = vpop.permute.xlu0 %230
        %v233 = vadd.f32 %v219, %v226
        %v234 = vadd.f32 %v220, %v226
        %v235 = vadd.f32 %v221, %v231
        %v236 = vadd.f32 %v222, %v231
        %v237 = vmax.f32 %v233, 0.0
        %v238 = vmax.f32 %v234, 0.0
        %v239 = vmax.f32 %v235, 0.0
        %v240 = vmax.f32 %v236, 0.0
        %v241 = vld [vmem:[%s2] sm:$0xff]
        %v242 = vld [vmem:[%s2 + $0x8] sm:$0xff]
        %v243 = vld [vmem:[%s2 + $0x10] sm:$0xff]
        %v244 = vld [vmem:[%s2 + $0x18] sm:$0xff]
        %vm245 = vcmask 130048
        %v247 = vsel %vm245, %v241, 0
        %v250 = vsel %vm245, %v242, 0
        %v253 = vsel %vm245, %v243, 0
        %v256 = vsel %vm245, %v244, 0
        %258 = vmatprep.subr.mxu0 %v238
        %259 = vmatpush1.msra.mxu0 %v237
        %260 = vmatprep.subr.mxu0 %v240
        %261 = vmatpush1.msra.mxu0 %v239
        %262 = vmatprep.subr.mxu0 0.0
        %263 = vmatpush1.msra.mxu0 0.0
        %264 = vmatprep.subr.mxu0 0.0
        %265 = vmatpush1.msra.mxu0 0.0
        %266 = vmatprep.subr.mxu0 0.0
        %267 = vmatpush1.msra.mxu0 0.0
        %268 = vmatprep.subr.mxu0 0.0
        %269 = vmatpush1.msra.mxu0 0.0
        %270 = vmatprep.subr.mxu0 0.0
        %271 = vmatpush1.msra.mxu0 0.0
        %272 = vmatprep.subr.mxu0 0.0
        %273 = vmatpush1.msra.mxu0 0.0
        %274 = vmatprep.subr.mxu0 0.0
        %275 = vmatpush1.msra.mxu0 0.0
        %276 = vmatprep.subr.mxu0 0.0
        %277 = vmatpush1.msra.mxu0 0.0
        %278 = vmatprep.subr.mxu0 0.0
        %279 = vmatpush1.msra.mxu0 0.0
        %280 = vmatprep.subr.mxu0 0.0
        %281 = vmatpush1.msra.mxu0 0.0
        %282 = vmatprep.subr.mxu0 0.0
        %283 = vmatpush1.msra.mxu0 0.0
        %284 = vmatprep.subr.mxu0 0.0
        %285 = vmatpush1.msra.mxu0 0.0
        %286 = vmatprep.subr.mxu0 0.0
        %287 = vmatpush1.msra.mxu0 0.0
        %288 = vmatprep.subr.mxu0 0.0
        %289 = vmatpush1.msra.mxu0 0.0
        %290 = vmatprep.subr.mxu0 0.0
        %291 = vmatpush1.msra.mxu0 0.0
        %292 = vmatprep.subr.mxu0 0.0
        %293 = vmatpush1.msra.mxu0 0.0
        %294 = vmatprep.subr.mxu0 0.0
        %295 = vmatpush1.msra.mxu0 0.0
        %296 = vmatprep.subr.mxu0 0.0
        %297 = vmatpush1.msra.mxu0 0.0
        %298 = vmatprep.subr.mxu0 0.0
        %299 = vmatpush1.msra.mxu0 0.0
        %300 = vmatprep.subr.mxu0 0.0
        %301 = vmatpush1.msra.mxu0 0.0
        %302 = vmatprep.subr.mxu0 0.0
        %303 = vmatpush1.msra.mxu0 0.0
        %304 = vmatprep.subr.mxu0 0.0
        %305 = vmatpush1.msra.mxu0 0.0
        %306 = vmatprep.subr.mxu0 0.0
        %307 = vmatpush1.msra.mxu0 0.0
        %308 = vmatprep.subr.mxu0 0.0
        %309 = vmatpush1.msra.mxu0 0.0
        %310 = vmatprep.subr.mxu0 0.0
        %311 = vmatpush1.msra.mxu0 0.0
        %312 = vmatprep.subr.mxu0 0.0
        %313 = vmatpush1.msra.mxu0 0.0
        %314 = vmatprep.subr.mxu0 0.0
        %315 = vmatpush1.msra.mxu0 0.0
        %316 = vmatprep.subr.mxu0 0.0
        %317 = vmatpush1.msra.mxu0 0.0
        %318 = vmatprep.subr.mxu0 0.0
        %319 = vmatpush1.msra.mxu0 0.0
        %320 = vmatprep.subr.mxu0 0.0
        %321 = vmatpush1.msra.mxu0 0.0
        %322 = vmatprep.mubr.f32.mxu0 0.0
        %323 = vmatmul.mubr.f32.gmra.mrb[0].mxu0 %v247
        %v324 = vpop.f32.mrb[0].mxu0
        %v325 = vadd.f32 0.0, %v324
        %v326 = vpop.f32.mrb[0].mxu0
        %v327 = vadd.f32 0.0, %v326
        %328 = vmatprep.mubr.f32.mxu0 0.0
        %329 = vmatmul.mubr.f32.gmra.mrb[0].mxu0 %v250
        %v330 = vpop.f32.mrb[0].mxu0
        %v331 = vadd.f32 0.0, %v330
        %v332 = vpop.f32.mrb[0].mxu0
        %v333 = vadd.f32 0.0, %v332
        %334 = vmatprep.mubr.f32.mxu0 0.0
        %335 = vmatmul.mubr.f32.gmra.mrb[0].mxu0 %v253
        %v336 = vpop.f32.mrb[0].mxu0
        %v337 = vadd.f32 0.0, %v336
        %v338 = vpop.f32.mrb[0].mxu0
        %v339 = vadd.f32 0.0, %v338
        %340 = vmatprep.mubr.f32.mxu0 0.0
        %341 = vmatmul.mubr.f32.gmra.mrb[0].mxu0 %v256
        %v342 = vpop.f32.mrb[0].mxu0
        %v343 = vadd.f32 0.0, %v342
        %v344 = vpop.f32.mrb[0].mxu0
        %v345 = vadd.f32 0.0, %v344
        %346 = vdwg.mxu0
        %347 = vst [vmem:[%s188] sm:$0xff] %v325
        %348 = vst [vmem:[%s188 + $0x8] sm:$0xff] %v327
        %349 = vst [vmem:[%s188 + $0x10] sm:$0xff] %v331
        %350 = vst [vmem:[%s188 + $0x18] sm:$0xff] %v333
        %351 = vst [vmem:[%s188 + $0x20] sm:$0xff] %v337
        %352 = vst [vmem:[%s188 + $0x28] sm:$0xff] %v339
        %353 = vst [vmem:[%s188 + $0x30] sm:$0xff] %v343
        %354 = vst [vmem:[%s188 + $0x38] sm:$0xff] %v345
        %s355 = sand.u32 %s109, 1
        %s356 = scalar_lea.sflag [#allocation3], %s355
        %s357 = sand.u32 %s109, 1
        %s358 = smul.addr %s357, 64
        %s359 = scalar_lea.vmem [#allocation2], %s358
        // Predicated region
        $region33: #{tpu_custom_call.1} parent=31 // pred_check
          %p360 = pneg %p119
        $region34: #{tpu_custom_call.1} parent=31 // pred_check_branch
          %362 = sbr.rel (%p360) target = $region36
        $region35: #{tpu_custom_call.1} parent=31 // pred_region
          %s363 = smul.u32 2, %s22
          %s365 = ssub.s32 1024, 1024
          %366 = vsyncadd %s356, %s365
          %s367 = smul.addr %s21, 8
          %s368 = sadd.s32 %s363, %s367
          %s369 = smul.addr %s368, 128
          %s370 = scalar_lea.hbm %s3, %s369
          %s371 = sshll.u32 %s359, 4
          %s372 = int_to_ptr.vmem [resolvable:$true] %s371
          %377 = dma.vmem_to_hbm [thread:$0]  %s372, 1024, %s370, %s356, 256, 256, 16
        $region36: #{tpu_custom_call.1} parent=31 // pred_fallthru
          _
      $region32: #{tpu_custom_call.1} parent=5 // pred_fallthru
        _
      %p378 = scmp.le.s32.totalorder 2, %s12
      // Predicated region
      $region37: #{tpu_custom_call.1} parent=5 // pred_check
        %p379 = pneg %p378
      $region38: #{tpu_custom_call.1} parent=5 // pred_check_branch
        %381 = sbr.rel (%p379) target = $region40
      $region39: #{tpu_custom_call.1} parent=5 // pred_region
        %s382 = ssub.s32 %s12, 2
        // Predicated region
        $region41: #{tpu_custom_call.1} parent=39 // pred_check
          %p383 = pneg %p125
        $region42: #{tpu_custom_call.1} parent=39 // pred_check_branch
          %385 = sbr.rel (%p383) target = $region44
        $region43: #{tpu_custom_call.1} parent=39 // pred_region
          %s386 = sand.u32 %s110, 1
          %s387 = scalar_lea.sflag [#allocation3], %s386
          %s388 = sand.u32 %s110, 1
          %s389 = smul.addr %s388, 64
          %s390 = scalar_lea.vmem [#allocation2], %s389
          %391 = dma.done %s387, 1024
        $region44: #{tpu_custom_call.1} parent=39 // pred_fallthru
          _
      $region40: #{tpu_custom_call.1} parent=5 // pred_fallthru
        _
    $region6: #{tpu_custom_call.1} parent=1 // loop_footer
      %s16 = sadd.s32 1, %s12
    $region7: #{tpu_custom_call.1} parent=1 // loop_footer_branch
      %11 = sbr.rel target = $region3
    $region8: #{tpu_custom_call.1} parent=1 // loop_exit
      _
    %392 = vsyncpa [#allocation3], 1
    %s393 = scalar_lea.sflag [#allocation3], 1
    %394 = vsyncpa %s393, 1

</llo_original>
